<compile_context>
chip_gen: v7x
topology: tpu7x:2x2x1
jax: 0.10.0
libtpu: 0.0.40
codegen_flags: <defaults>
</compile_context>

<pallas_src>
import functools

import jax
import jax.numpy as jnp
from jax.experimental import pallas as pl
from jax.experimental.pallas import tpu as pltpu


# ---------------------------------------------------------------------------
# Kernel 1: 3x3 "same" conv as ONE matmul (K = 3*W*Cin, M = NB*H)
#           + per-step BatchNorm partial statistics.
# ---------------------------------------------------------------------------
def conv3x3_kernel(x_ref, w_ref, y_ref, psum_ref, pssq_ref):
    # x_ref   : (NB, H, W*Cin)     unpadded input rows, lane layout (w, ci)
    # w_ref   : (3*W*Cin, W*Cout)  dy-stacked banded weight matrix (resident)
    # y_ref   : (NB, H, W*Cout)    conv output (lane-dense last dim)
    # psum_ref: (1, 1, W*Cout)     partial sum over this step's NB*H rows
    # pssq_ref: (1, 1, W*Cout)     partial sum of squares
    NB, H, WCin = x_ref.shape
    WCout = y_ref.shape[2]

    x = x_ref[...]                                          # single block load
    zrow = jnp.zeros((NB, 1, WCin), x.dtype)
    up = jnp.concatenate([zrow, x[:, :H - 1, :]], axis=1)   # row h-1 (dy=0 tap)
    dn = jnp.concatenate([x[:, 1:, :], zrow], axis=1)       # row h+1 (dy=2 tap)
    # K-merged LHS: all three dy taps in one contraction, M = NB*H rows.
    lhs = jnp.concatenate([up, x, dn], axis=-1).reshape(NB * H, 3 * WCin)

    acc = jnp.dot(lhs, w_ref[...], preferred_element_type=jnp.float32)
    y_ref[...] = acc.reshape(NB, H, WCout).astype(y_ref.dtype)

    psum_ref[...] = acc.sum(axis=0, keepdims=True).reshape(1, 1, WCout)
    pssq_ref[...] = (acc * acc).sum(axis=0, keepdims=True).reshape(1, 1, WCout)


# ---------------------------------------------------------------------------
# Kernel 2: fused batch-norm (folded per-channel scale/shift) + ReLU
# ---------------------------------------------------------------------------
def bn_relu_kernel(y_ref, scale_ref, shift_ref, o_ref):
    # y_ref/o_ref: (R, W*Cout); scale/shift: (1, W*Cout)
    o_ref[...] = jnp.maximum(y_ref[...] * scale_ref[...] + shift_ref[...], 0.0)


# ---------------------------------------------------------------------------
# Wrapper helpers
# ---------------------------------------------------------------------------
def _build_banded_weights(w_oihw, W):
    """Fold the (dx, ci) taps of a 3x3 conv into a banded (W*Cin, W*Cout)
    matrix per dy tap, then stack the three dy taps along K so the whole conv
    is a single (3*W*Cin, W*Cout) contraction.  Out-of-range dx taps (the W
    halo) get zero weights, so the input never needs W padding."""
    w_hwio = jnp.transpose(w_oihw, (2, 3, 1, 0)).astype(jnp.float32)  # (3,3,Cin,Cout)
    Cin, Cout = w_hwio.shape[2], w_hwio.shape[3]
    wq = jnp.arange(W)[:, None]               # input pixel index
    wo = jnp.arange(W)[None, :]               # output pixel index
    dx = wq - wo + 1                          # tap index; valid taps are 0..2
    valid = ((dx >= 0) & (dx <= 2)).astype(jnp.float32)
    dx_c = jnp.clip(dx, 0, 2)
    blocks = w_hwio[:, dx_c, :, :]            # (3, W, W, Cin, Cout)
    blocks = blocks * valid[None, :, :, None, None]
    # -> index [dy, wq*Cin+ci, wo*Cout+co], then stack dy along K.
    w3 = blocks.transpose(0, 1, 3, 2, 4).reshape(3, W * Cin, W * Cout)
    return w3.reshape(3 * W * Cin, W * Cout)


def _auto_batch_block(N, H, W, Cin, Cout, target_bytes=8 << 20):
    """Pick NB so one step's x+y blocks are ~MB-scale (amortizes per-step
    overhead) while dividing N.  On v7x, prefer N/NB even (megacore)."""
    per_img = H * W * (Cin + Cout) * 4
    nb = max(1, min(N, target_bytes // max(per_img, 1)))
    while nb > 1 and N % nb != 0:
        nb -= 1
    return nb


def _pick_row_block(rows):
    """Row block for the flat elementwise pass (multiple of 8, divides rows)."""
    for cand in (1024, 512, 256, 128, 64, 32, 16, 8):
        if rows >= cand and rows % cand == 0:
            return cand
    return rows


# ---------------------------------------------------------------------------
# Forward
# ---------------------------------------------------------------------------
def _conv_block_forward_impl(x_nchw, w_oihw, bias, gamma, beta, eps,
                             batch_block, use_bf16_matmul):
    # The conv bias shifts the per-channel mean by exactly the bias, so it
    # cancels in training-mode BatchNorm: (conv+b) - mean(conv+b) == conv - mean(conv).
    del bias

    N, Cin, H, W = x_nchw.shape
    Cout = w_oihw.shape[0]
    NB = batch_block if batch_block is not None else _auto_batch_block(N, H, W, Cin, Cout)
    assert N % NB == 0, "batch_block must divide N"
    G = N // NB
    WCin, WCout = W * Cin, W * Cout

    mm_dtype = jnp.bfloat16 if use_bf16_matmul else jnp.float32

    # NHWC, rows flattened over (w, ci).  No H padding: halo handled in-kernel.
    x = jnp.transpose(x_nchw, (0, 2, 3, 1))
    x_flat = x.reshape(N, H, WCin).astype(mm_dtype)

    w_big = _build_banded_weights(w_oihw, W).astype(mm_dtype)  # (3*WCin, WCout)

    # VMEM budget: double-buffered x and y blocks + resident weights + partials.
    x_blk = NB * H * WCin * x_flat.dtype.itemsize
    y_blk = NB * H * WCout * 4
    w_bytes = 3 * WCin * WCout * w_big.dtype.itemsize
    vmem_est = 2 * (x_blk + y_blk) + 2 * w_bytes + 8 * WCout * 4
    vmem_limit = int(min(100 << 20, max(32 << 20, 2 * vmem_est)))

    # --- pass 1: conv + per-step BN partial stats ("parallel" batch axis) ---
    y, psum, pssq = pl.pallas_call(
        conv3x3_kernel,
        out_shape=(
            jax.ShapeDtypeStruct((N, H, WCout), jnp.float32),
            jax.ShapeDtypeStruct((G, 1, WCout), jnp.float32),
            jax.ShapeDtypeStruct((G, 1, WCout), jnp.float32),
        ),
        grid=(G,),
        in_specs=[
            pl.BlockSpec((NB, H, WCin), lambda g: (g, 0, 0)),
            pl.BlockSpec((3 * WCin, WCout), lambda g: (0, 0)),     # resident
        ],
        out_specs=(
            pl.BlockSpec((NB, H, WCout), lambda g: (g, 0, 0)),
            pl.BlockSpec((1, 1, WCout), lambda g: (g, 0, 0)),      # per-step partials
            pl.BlockSpec((1, 1, WCout), lambda g: (g, 0, 0)),
        ),
        compiler_params=pltpu.CompilerParams(
            dimension_semantics=("parallel",),
            vmem_limit_bytes=vmem_limit),
    )(x_flat, w_big)

    # --- tiny XLA glue: reduce partials, fold BN into scale/shift -----------
    count = N * H * W
    s = psum.reshape(G, W, Cout).sum(axis=(0, 1))
    ssq = pssq.reshape(G, W, Cout).sum(axis=(0, 1))
    mean = s / count
    var = ssq / count - mean * mean           # biased variance (BN training)
    scale = gamma.astype(jnp.float32) * jax.lax.rsqrt(var + eps)
    shift = beta.astype(jnp.float32) - mean * scale
    scale_t = jnp.tile(scale, W).reshape(1, WCout)
    shift_t = jnp.tile(shift, W).reshape(1, WCout)

    # --- pass 2: fused normalize + ReLU on a flat lane-dense layout ---------
    rows = N * H
    R = _pick_row_block(rows)
    y_flat = y.reshape(rows, WCout)
    out_flat = pl.pallas_call(
        bn_relu_kernel,
        out_shape=jax.ShapeDtypeStruct((rows, WCout), jnp.float32),
        grid=(rows // R,),
        in_specs=[
            pl.BlockSpec((R, WCout), lambda r: (r, 0)),
            pl.BlockSpec((1, WCout), lambda r: (0, 0)),
            pl.BlockSpec((1, WCout), lambda r: (0, 0)),
        ],
        out_specs=pl.BlockSpec((R, WCout), lambda r: (r, 0)),
        input_output_aliases={0: 0},          # in-place on y
        compiler_params=pltpu.CompilerParams(
            dimension_semantics=("parallel",)),
    )(y_flat, scale_t, shift_t)

    out_nhwc = out_flat.reshape(N, H, W, Cout)
    # TODO(synk): if the consumer can accept NHWC, return out_nhwc and skip
    # this transpose (and the initial NCHW->NHWC one) to save two HBM passes.
    return jnp.transpose(out_nhwc, (0, 3, 1, 2))


_forward_jit = functools.partial(
    jax.jit,
    static_argnames=("eps", "batch_block", "use_bf16_matmul"))(_conv_block_forward_impl)


def conv_block_forward(x_nchw, w_oihw, bias, gamma, beta, eps=1e-5,
                       batch_block=None, use_bf16_matmul=False):
    return _forward_jit(x_nchw, w_oihw, bias, gamma, beta,
                        eps=eps, batch_block=batch_block,
                        use_bf16_matmul=use_bf16_matmul)


# ---------------------------------------------------------------------------
# Pure-JAX reference (for correctness check)
# ---------------------------------------------------------------------------
def conv_block_ref(x_nchw, w_oihw, bias, gamma, beta, eps=1e-5):
    x = jnp.transpose(x_nchw, (0, 2, 3, 1))
    w_hwio = jnp.transpose(w_oihw, (2, 3, 1, 0))
    y = jax.lax.conv_general_dilated(
        x, w_hwio, (1, 1), "SAME",
        dimension_numbers=("NHWC", "HWIO", "NHWC")) + bias
    mean = y.mean((0, 1, 2))
    var = y.var((0, 1, 2))
    out = jnp.maximum((y - mean) / jnp.sqrt(var + eps) * gamma + beta, 0.0)
    return jnp.transpose(out, (0, 3, 1, 2))


if __name__ == "__main__":
    key = jax.random.PRNGKey(0)
    k1, k2, k3 = jax.random.split(key, 3)

    N, Cin, Cout, H, W = 2, 4, 8, 16, 16

    x = jax.random.normal(k1, (N, Cin, H, W), jnp.float32)
    # Deterministic parameter init (PyTorch-like scale for conv weight/bias).
    fan_in = Cin * 3 * 3
    bound = 1.0 / (fan_in ** 0.5)
    w = jax.random.uniform(k2, (Cout, Cin, 3, 3), jnp.float32, -bound, bound)
    b = jax.random.uniform(k3, (Cout,), jnp.float32, -bound, bound)
    gamma = jnp.ones((Cout,), jnp.float32)   # BatchNorm2d default weight
    beta = jnp.zeros((Cout,), jnp.float32)   # BatchNorm2d default bias

    out = conv_block_forward(x, w, b, gamma, beta)
    out = jax.block_until_ready(out)

    ref = conv_block_ref(x, w, b, gamma, beta)
    assert out.shape == (N, Cout, H, W)
    assert jnp.allclose(out, ref, atol=1e-4, rtol=1e-4)

    print("KERNEL_OK")
</pallas_src>

<mosaic_0001>
module attributes {stable_mosaic.version = 11 : i64} {
  func.func @conv3x3_kernel(%arg0: i32, %arg1: memref<2x16x64xf32, #tpu.memory_space<vmem>>, %arg2: memref<192x128xf32, #tpu.memory_space<vmem>>, %arg3: memref<2x16x128xf32, #tpu.memory_space<vmem>>, %arg4: memref<1x1x128xf32, #tpu.memory_space<vmem>>, %arg5: memref<1x1x128xf32, #tpu.memory_space<vmem>>) attributes {dimension_semantics = [#tpu.dimension_semantics<parallel>], iteration_bounds = array<i64: 1>, scalar_prefetch = 0 : i64, scratch_operands = 0 : i64, tpu.core_type = #tpu.core_type<tc>, window_params = [{transform_indices = @transform_0, window_bounds = array<i64: 2, 16, 64>}, {pipeline_mode = #tpu.pipeline_mode<synchronous>, transform_indices = @transform_1, window_bounds = array<i64: 192, 128>}, {transform_indices = @transform_2, window_bounds = array<i64: 2, 16, 128>}, {transform_indices = @transform_3, window_bounds = array<i64: 1, 1, 128>}, {transform_indices = @transform_4, window_bounds = array<i64: 1, 1, 128>}]} {
    %c0 = arith.constant 0 : index
    %c0_0 = arith.constant 0 : index
    %c0_1 = arith.constant 0 : index
    %0 = vector.load %arg1[%c0, %c0_0, %c0_1] : memref<2x16x64xf32, #tpu.memory_space<vmem>>, vector<2x16x64xf32>
    %cst = arith.constant 0.000000e+00 : f32
    %1 = vector.broadcast %cst : f32 to vector<2x1x64xf32>
    %2 = vector.extract_strided_slice %0 {offsets = [0, 0, 0], sizes = [2, 15, 64], strides = [1, 1, 1]} : vector<2x16x64xf32> to vector<2x15x64xf32>
    %3 = tpu.concatenate %1, %2 in 1 : vector<2x1x64xf32>, vector<2x15x64xf32> -> vector<2x16x64xf32>
    %4 = vector.extract_strided_slice %0 {offsets = [0, 1, 0], sizes = [2, 15, 64], strides = [1, 1, 1]} : vector<2x16x64xf32> to vector<2x15x64xf32>
    %5 = tpu.concatenate %4, %1 in 1 : vector<2x15x64xf32>, vector<2x1x64xf32> -> vector<2x16x64xf32>
    %6 = tpu.concatenate %3, %0, %5 in 2 : vector<2x16x64xf32>, vector<2x16x64xf32>, vector<2x16x64xf32> -> vector<2x16x192xf32>
    %7 = vector.shape_cast %6 : vector<2x16x192xf32> to vector<32x192xf32>
    %c0_2 = arith.constant 0 : index
    %c0_3 = arith.constant 0 : index
    %8 = vector.load %arg2[%c0_2, %c0_3] : memref<192x128xf32, #tpu.memory_space<vmem>>, vector<192x128xf32>
    %cst_4 = arith.constant dense<0.000000e+00> : vector<32x128xf32>
    %9 = tpu.matmul %7, %8, %cst_4 {dimension_numbers = #tpu.dot_dimension_numbers<[1], [0], [0], [1], [0, 0, 1, 1], [], []>} : vector<32x192xf32>, vector<192x128xf32>, vector<32x128xf32> -> vector<32x128xf32>
    %10 = vector.shape_cast %9 : vector<32x128xf32> to vector<2x16x128xf32>
    %c0_5 = arith.constant 0 : index
    %c0_6 = arith.constant 0 : index
    %c0_7 = arith.constant 0 : index
    %11 = vector.load %arg3[%c0_5, %c0_6, %c0_7] : memref<2x16x128xf32, #tpu.memory_space<vmem>>, vector<2x16x128xf32>
    tpu.vector_store %arg3[%c0_5, %c0_6, %c0_7], %10 {strides = array<i32>} : memref<2x16x128xf32, #tpu.memory_space<vmem>>, vector<2x16x128xf32>,
    %cst_8 = arith.constant dense<0.000000e+00> : vector<128xf32>
    %12 = vector.multi_reduction <add>, %9, %cst_8 [0] : vector<32x128xf32> to vector<128xf32>
    %13 = vector.shape_cast %12 : vector<128xf32> to vector<1x128xf32>
    %14 = vector.shape_cast %13 : vector<1x128xf32> to vector<1x1x128xf32>
    %c0_9 = arith.constant 0 : index
    %c0_10 = arith.constant 0 : index
    %c0_11 = arith.constant 0 : index
    %15 = vector.load %arg4[%c0_9, %c0_10, %c0_11] : memref<1x1x128xf32, #tpu.memory_space<vmem>>, vector<1x1x128xf32>
    tpu.vector_store %arg4[%c0_9, %c0_10, %c0_11], %14 {strides = array<i32>} : memref<1x1x128xf32, #tpu.memory_space<vmem>>, vector<1x1x128xf32>,
    %16 = arith.mulf %9, %9 : vector<32x128xf32>
    %cst_12 = arith.constant dense<0.000000e+00> : vector<128xf32>
    %17 = vector.multi_reduction <add>, %16, %cst_12 [0] : vector<32x128xf32> to vector<128xf32>
    %18 = vector.shape_cast %17 : vector<128xf32> to vector<1x128xf32>
    %19 = vector.shape_cast %18 : vector<1x128xf32> to vector<1x1x128xf32>
    %c0_13 = arith.constant 0 : index
    %c0_14 = arith.constant 0 : index
    %c0_15 = arith.constant 0 : index
    %20 = vector.load %arg5[%c0_13, %c0_14, %c0_15] : memref<1x1x128xf32, #tpu.memory_space<vmem>>, vector<1x1x128xf32>
    tpu.vector_store %arg5[%c0_13, %c0_14, %c0_15], %19 {strides = array<i32>} : memref<1x1x128xf32, #tpu.memory_space<vmem>>, vector<1x1x128xf32>,
    return
  }
  func.func @transform_0(%arg0: i32) -> (i32, i32, i32) {
    %c0_i32 = arith.constant 0 : i32
    %c0_i32_0 = arith.constant 0 : i32
    %c0_i32_1 = arith.constant 0 : i32
    return %arg0, %c0_i32, %c0_i32_0 : i32, i32, i32
  }
  func.func @transform_1(%arg0: i32) -> (i32, i32) {
    %c0_i32 = arith.constant 0 : i32
    %c0_i32_0 = arith.constant 0 : i32
    %c0_i32_1 = arith.constant 0 : i32
    return %c0_i32, %c0_i32_0 : i32, i32
  }
  func.func @transform_2(%arg0: i32) -> (i32, i32, i32) {
    %c0_i32 = arith.constant 0 : i32
    %c0_i32_0 = arith.constant 0 : i32
    %c0_i32_1 = arith.constant 0 : i32
    return %arg0, %c0_i32, %c0_i32_0 : i32, i32, i32
  }
  func.func @transform_3(%arg0: i32) -> (i32, i32, i32) {
    %c0_i32 = arith.constant 0 : i32
    %c0_i32_0 = arith.constant 0 : i32
    %c0_i32_1 = arith.constant 0 : i32
    return %arg0, %c0_i32, %c0_i32_0 : i32, i32, i32
  }
  func.func @transform_4(%arg0: i32) -> (i32, i32, i32) {
    %c0_i32 = arith.constant 0 : i32
    %c0_i32_0 = arith.constant 0 : i32
    %c0_i32_1 = arith.constant 0 : i32
    return %arg0, %c0_i32, %c0_i32_0 : i32, i32, i32
  }
}

module attributes {stable_mosaic.version = 11 : i64} {
  func.func @bn_relu_kernel(%arg0: i32, %arg1: memref<32x128xf32, #tpu.memory_space<vmem>>, %arg2: memref<1x128xf32, #tpu.memory_space<vmem>>, %arg3: memref<1x128xf32, #tpu.memory_space<vmem>>, %arg4: memref<32x128xf32, #tpu.memory_space<vmem>>) attributes {dimension_semantics = [#tpu.dimension_semantics<parallel>], iteration_bounds = array<i64: 1>, scalar_prefetch = 0 : i64, scratch_operands = 0 : i64, tpu.core_type = #tpu.core_type<tc>, window_params = [{transform_indices = @transform_0, window_bounds = array<i64: 32, 128>}, {pipeline_mode = #tpu.pipeline_mode<synchronous>, transform_indices = @transform_1, window_bounds = array<i64: 1, 128>}, {pipeline_mode = #tpu.pipeline_mode<synchronous>, transform_indices = @transform_2, window_bounds = array<i64: 1, 128>}, {transform_indices = @transform_3, window_bounds = array<i64: 32, 128>}]} {
    %c0 = arith.constant 0 : index
    %c0_0 = arith.constant 0 : index
    %0 = vector.load %arg1[%c0, %c0_0] : memref<32x128xf32, #tpu.memory_space<vmem>>, vector<32x128xf32>
    %c0_1 = arith.constant 0 : index
    %c0_2 = arith.constant 0 : index
    %1 = vector.load %arg2[%c0_1, %c0_2] : memref<1x128xf32, #tpu.memory_space<vmem>>, vector<1x128xf32>
    %2 = vector.broadcast %1 : vector<1x128xf32> to vector<32x128xf32>
    %3 = arith.mulf %0, %2 : vector<32x128xf32>
    %c0_3 = arith.constant 0 : index
    %c0_4 = arith.constant 0 : index
    %4 = vector.load %arg3[%c0_3, %c0_4] : memref<1x128xf32, #tpu.memory_space<vmem>>, vector<1x128xf32>
    %5 = vector.broadcast %4 : vector<1x128xf32> to vector<32x128xf32>
    %6 = arith.addf %3, %5 : vector<32x128xf32>
    %cst = arith.constant 0.000000e+00 : f32
    %7 = vector.broadcast %cst : f32 to vector<32x128xf32>
    %8 = arith.maximumf %6, %7 : vector<32x128xf32>
    %c0_5 = arith.constant 0 : index
    %c0_6 = arith.constant 0 : index
    %9 = vector.load %arg4[%c0_5, %c0_6] : memref<32x128xf32, #tpu.memory_space<vmem>>, vector<32x128xf32>
    tpu.vector_store %arg4[%c0_5, %c0_6], %8 {strides = array<i32>} : memref<32x128xf32, #tpu.memory_space<vmem>>, vector<32x128xf32>,
    return
  }
  func.func @transform_0(%arg0: i32) -> (i32, i32) {
    %c0_i32 = arith.constant 0 : i32
    %c0_i32_0 = arith.constant 0 : i32
    return %arg0, %c0_i32 : i32, i32
  }
  func.func @transform_1(%arg0: i32) -> (i32, i32) {
    %c0_i32 = arith.constant 0 : i32
    %c0_i32_0 = arith.constant 0 : i32
    %c0_i32_1 = arith.constant 0 : i32
    return %c0_i32, %c0_i32_0 : i32, i32
  }
  func.func @transform_2(%arg0: i32) -> (i32, i32) {
    %c0_i32 = arith.constant 0 : i32
    %c0_i32_0 = arith.constant 0 : i32
    %c0_i32_1 = arith.constant 0 : i32
    return %c0_i32, %c0_i32_0 : i32, i32
  }
  func.func @transform_3(%arg0: i32) -> (i32, i32) {
    %c0_i32 = arith.constant 0 : i32
    %c0_i32_0 = arith.constant 0 : i32
    return %arg0, %c0_i32 : i32, i32
  }
}

</mosaic_0001>

<llo_original>
// kernel: tile.13
$region0: #{tile.13}
  #allocation0 [shape = 's32[1]{0}', space=sflag, size = 0x4, scoped, tag = 'scoped memory for tile.13']
  %s0 = inlined_call_operand.vmem [shape: f32[8], index: 0, kind: input, shape index: {}]
  %s1 = inlined_call_operand.vmem [shape: f32[16,8], index: 1, kind: output, shape index: {}]
  // Predicated region
  $region2: #{tile.13} parent=0 // pred_check
    _
  $region3: #{tile.13} parent=0 // pred_check_branch
    %3 = sbr.rel (0) target = $region5
  $region4: #{tile.13} parent=0 // pred_region
    _
  $region5: #{tile.13} parent=0 // pred_fallthru
    _
  %v4 = vld [vmem:[%s0] ss:$0 sm:$0xff]
  %5 = vst [vmem:[%s1] sm:$0xff] %v4
  %s6 = scalar_lea.vmem %s1, 8
  %7 = vst [vmem:[%s6] sm:$0xff] %v4

// kernel: tile.14
$region0: #{tile.14}
  %s0 = inlined_call_operand.vmem [shape: f32[16,8], index: 0, kind: input, shape index: {}]
  %s1 = inlined_call_operand.vmem [shape: f32[1,128], index: 1, kind: output, shape index: {}]
  $region1: #{tile.14} parent=0
    #allocation0 [shape = 'u8[4096]{0}', space=vmem, size = 0x1000, scoped, tag = 'scoped mem for output reshape']
    %v2 = vld [vmem:[%s0] sm:$0x1]
    %vm3 = vcmask 64512
    %4 = vst.msk [vmem:[#allocation0] sm:$0x1] %vm3, %v2
    %s5 = scalar_lea.vmem %s0, 15
    %v6 = vld [vmem:[%s5] sm:$0x1]
    %7 = vrot.lane.b32.xlu0 %v6, 120
    %v8 = vpop.permute.xlu0 %7
    %vm9 = vcmask 1048512
    %10 = vst.msk [vmem:[#allocation0] sm:$0x1] %vm9, %v8
    %s11 = scalar_lea.vmem %s0, 14
    %v12 = vld [vmem:[%s11] sm:$0x1]
    %13 = vrot.lane.b32.xlu0 %v12, 112
    %v14 = vpop.permute.xlu0 %13
    %vm15 = vcmask 982912
    %16 = vst.msk [vmem:[#allocation0] sm:$0x1] %vm15, %v14
    %s17 = scalar_lea.vmem %s0, 13
    %v18 = vld [vmem:[%s17] sm:$0x1]
    %19 = vrot.lane.b32.xlu0 %v18, 104
    %v20 = vpop.permute.xlu0 %19
    %vm21 = vcmask 917312
    %22 = vst.msk [vmem:[#allocation0] sm:$0x1] %vm21, %v20
    %s23 = scalar_lea.vmem %s0, 12
    %v24 = vld [vmem:[%s23] sm:$0x1]
    %25 = vrot.lane.b32.xlu0 %v24, 96
    %v26 = vpop.permute.xlu0 %25
    %vm27 = vcmask 851712
    %28 = vst.msk [vmem:[#allocation0] sm:$0x1] %vm27, %v26
    %s29 = scalar_lea.vmem %s0, 11
    %v30 = vld [vmem:[%s29] sm:$0x1]
    %31 = vrot.lane.b32.xlu0 %v30, 88
    %v32 = vpop.permute.xlu0 %31
    %vm33 = vcmask 786112
    %34 = vst.msk [vmem:[#allocation0] sm:$0x1] %vm33, %v32
    %s35 = scalar_lea.vmem %s0, 10
    %v36 = vld [vmem:[%s35] sm:$0x1]
    %37 = vrot.lane.b32.xlu0 %v36, 80
    %v38 = vpop.permute.xlu0 %37
    %vm39 = vcmask 720512
    %40 = vst.msk [vmem:[#allocation0] sm:$0x1] %vm39, %v38
    %s41 = scalar_lea.vmem %s0, 9
    %v42 = vld [vmem:[%s41] sm:$0x1]
    %43 = vrot.lane.b32.xlu0 %v42, 72
    %v44 = vpop.permute.xlu0 %43
    %vm45 = vcmask 654912
    %46 = vst.msk [vmem:[#allocation0] sm:$0x1] %vm45, %v44
    %s47 = scalar_lea.vmem %s0, 8
    %v48 = vld [vmem:[%s47] sm:$0x1]
    %49 = vrot.lane.b32.xlu0 %v48, 64
    %v50 = vpop.permute.xlu0 %49
    %vm51 = vcmask 589312
    %52 = vst.msk [vmem:[#allocation0] sm:$0x1] %vm51, %v50
    %s53 = scalar_lea.vmem %s0, 7
    %v54 = vld [vmem:[%s53] sm:$0x1]
    %55 = vrot.lane.b32.xlu0 %v54, 56
    %v56 = vpop.permute.xlu0 %55
    %vm57 = vcmask 523712
    %58 = vst.msk [vmem:[#allocation0] sm:$0x1] %vm57, %v56
    %s59 = scalar_lea.vmem %s0, 6
    %v60 = vld [vmem:[%s59] sm:$0x1]
    %61 = vrot.lane.b32.xlu0 %v60, 48
    %v62 = vpop.permute.xlu0 %61
    %vm63 = vcmask 458112
    %64 = vst.msk [vmem:[#allocation0] sm:$0x1] %vm63, %v62
    %s65 = scalar_lea.vmem %s0, 5
    %v66 = vld [vmem:[%s65] sm:$0x1]
    %67 = vrot.lane.b32.xlu0 %v66, 40
    %v68 = vpop.permute.xlu0 %67
    %vm69 = vcmask 392512
    %70 = vst.msk [vmem:[#allocation0] sm:$0x1] %vm69, %v68
    %s71 = scalar_lea.vmem %s0, 4
    %v72 = vld [vmem:[%s71] sm:$0x1]
    %73 = vrot.lane.b32.xlu0 %v72, 32
    %v74 = vpop.permute.xlu0 %73
    %vm75 = vcmask 326912
    %76 = vst.msk [vmem:[#allocation0] sm:$0x1] %vm75, %v74
    %s77 = scalar_lea.vmem %s0, 3
    %v78 = vld [vmem:[%s77] sm:$0x1]
    %79 = vrot.lane.b32.xlu0 %v78, 24
    %v80 = vpop.permute.xlu0 %79
    %vm81 = vcmask 261312
    %82 = vst.msk [vmem:[#allocation0] sm:$0x1] %vm81, %v80
    %s83 = scalar_lea.vmem %s0, 2
    %v84 = vld [vmem:[%s83] sm:$0x1]
    %85 = vrot.lane.b32.xlu0 %v84, 16
    %v86 = vpop.permute.xlu0 %85
    %vm87 = vcmask 195712
    %88 = vst.msk [vmem:[#allocation0] sm:$0x1] %vm87, %v86
    %s89 = scalar_lea.vmem %s0, 1
    %v90 = vld [vmem:[%s89] sm:$0x1]
    %91 = vrot.lane.b32.xlu0 %v90, 8
    %v92 = vpop.permute.xlu0 %91
    %vm93 = vcmask 130112
    %94 = vst.msk [vmem:[#allocation0] sm:$0x1] %vm93, %v92
    %s96 = sshllo.u32 0, 1
    %v98 = vld [vmem:[#allocation0] sm:%s96]
    %s99 = sshllo.u32 0, 1
    %100 = vst [vmem:[%s1] sm:%s99] %v98

// kernel: _conv_block_forward_impl.2
$region0: #{_conv_block_forward_impl.2}
  #allocation0 [shape = 'u32[]', space=smem, size = 0x4, offset = 0x4, fixed_abs, tag = 'smem constant byte address 0x4 - core index']
  #allocation1 [shape = 'u32[144,128]{1,0:T(1,128)}', space=vmem, size = 0x12000, scoped, tag = 'internal scratch']
  %s0 = inlined_call_operand.vmem [shape: f32[2,16,64], index: 0, kind: input, shape index: {}]
  %s1 = inlined_call_operand.vmem [shape: f32[192,128], index: 1, kind: input, shape index: {}]
  %s2 = inlined_call_operand.vmem [shape: f32[2,16,128], index: 2, kind: output, shape index: {0}]
  %s3 = inlined_call_operand.vmem [shape: f32[1,1,128], index: 3, kind: output, shape index: {1}]
  %s4 = inlined_call_operand.vmem [shape: f32[1,1,128], index: 4, kind: output, shape index: {2}]
  %5 = xla_tuple %s2, %s3, %s4
  %s6 = sld [smem:[#allocation0]]
  $region34: #{_conv_block_forward_impl.2} parent=0
    _
  %s8 = ssub.s32 1, %s6
  %s9 = scalar_select 0, %s8, %s6
  // Predicated region
  $region2: #{_conv_block_forward_impl.2} parent=0 // pred_check
    _
  $region3: #{_conv_block_forward_impl.2} parent=0 // pred_check_branch
    %11 = sbr.rel (0) target = $region5
  $region4: #{_conv_block_forward_impl.2} parent=0 // pred_region
    _
  $region5: #{_conv_block_forward_impl.2} parent=0 // pred_fallthru
    _
  // Predicated region
  $region6: #{_conv_block_forward_impl.2} parent=0 // pred_check
    _
  $region7: #{_conv_block_forward_impl.2} parent=0 // pred_check_branch
    %13 = sbr.rel (0) target = $region9
  $region8: #{_conv_block_forward_impl.2} parent=0 // pred_region
    _
  $region9: #{_conv_block_forward_impl.2} parent=0 // pred_fallthru
    _
  %v14 = vld [vmem:[%s0] sm:$0xff]
  %v15 = vld [vmem:[%s0 + $0x8] sm:$0xff]
  %v16 = vld [vmem:[%s0 + $0x10] sm:$0xff]
  %v17 = vld [vmem:[%s0 + $0x18] sm:$0xff]
  %vm22 = vcmask 1040384
  %v23 = vrot.slane %v14, 7
  %v24 = vrot.slane %v15, 7
  %v25 = vsel %vm22, %v23, %v24
  %v26 = vrot.slane %v16, 7
  %v27 = vrot.slane %v17, 7
  %v28 = vsel %vm22, %v26, %v27
  %v33 = vsel %vm22, 0.0, %v23
  %v34 = vsel %vm22, 0.0, %v26
  %vm35 = vcmask 1046528
  %v36 = vrot.slane %v14, 1
  %v37 = vrot.slane %v15, 1
  %v38 = vsel %vm35, %v36, %v37
  %v39 = vrot.slane %v16, 1
  %v40 = vrot.slane %v17, 1
  %v41 = vsel %vm35, %v39, %v40
  %v44 = vsel %vm35, %v37, 0.0
  %v45 = vsel %vm35, %v40, 0.0
  %46 = vrot.lane.b32.xlu0 %v14, 64
  %v47 = vpop.permute.xlu0 %46
  %48 = vrot.lane.b32.xlu0 %v15, 64
  %v49 = vpop.permute.xlu0 %48
  %50 = vrot.lane.b32.xlu0 %v16, 64
  %v51 = vpop.permute.xlu0 %50
  %52 = vrot.lane.b32.xlu0 %v17, 64
  %v53 = vpop.permute.xlu0 %52
  %vm58 = vcmask 523264
  %v59 = vsel %vm58, %v33, %v47
  %v60 = vsel %vm58, %v25, %v49
  %v61 = vsel %vm58, %v34, %v51
  %v62 = vsel %vm58, %v28, %v53
  %v63 = vld [vmem:[%s1] sm:$0xff]
  %v64 = vld [vmem:[%s1 + $0x8] sm:$0xff]
  %v65 = vld [vmem:[%s1 + $0x10] sm:$0xff]
  %v66 = vld [vmem:[%s1 + $0x18] sm:$0xff]
  %v67 = vld [vmem:[%s1 + $0x20] sm:$0xff]
  %v68 = vld [vmem:[%s1 + $0x28] sm:$0xff]
  %v69 = vld [vmem:[%s1 + $0x30] sm:$0xff]
  %v70 = vld [vmem:[%s1 + $0x38] sm:$0xff]
  %v71 = vld [vmem:[%s1 + $0x40] sm:$0xff]
  %v72 = vld [vmem:[%s1 + $0x48] sm:$0xff]
  %v73 = vld [vmem:[%s1 + $0x50] sm:$0xff]
  %v74 = vld [vmem:[%s1 + $0x58] sm:$0xff]
  %v75 = vld [vmem:[%s1 + $0x60] sm:$0xff]
  %v76 = vld [vmem:[%s1 + $0x68] sm:$0xff]
  %v77 = vld [vmem:[%s1 + $0x70] sm:$0xff]
  %v78 = vld [vmem:[%s1 + $0x78] sm:$0xff]
  %v79 = vld [vmem:[%s1 + $0x80] sm:$0xff]
  %v80 = vld [vmem:[%s1 + $0x88] sm:$0xff]
  %v81 = vld [vmem:[%s1 + $0x90] sm:$0xff]
  %v82 = vld [vmem:[%s1 + $0x98] sm:$0xff]
  %v83 = vld [vmem:[%s1 + $0xa0] sm:$0xff]
  %v84 = vld [vmem:[%s1 + $0xa8] sm:$0xff]
  %v85 = vld [vmem:[%s1 + $0xb0] sm:$0xff]
  %v86 = vld [vmem:[%s1 + $0xb8] sm:$0xff]
  %v87 = vsel %vm58, %v38, 0
  %v90 = vsel %vm58, %v44, 0
  %v92 = vsel %vm58, %v41, 0
  %v95 = vsel %vm58, %v45, 0
  %97 = vmatprep.subr.mxu0 0.0
  %98 = vmatpush1.msra.mxu0 %v63
  %99 = vmatprep.subr.mxu0 0.0
  %100 = vmatpush1.msra.mxu0 %v64
  %101 = vmatprep.subr.mxu0 0.0
  %102 = vmatpush1.msra.mxu0 %v65
  %103 = vmatprep.subr.mxu0 0.0
  %104 = vmatpush1.msra.mxu0 %v66
  %105 = vmatprep.subr.mxu0 0.0
  %106 = vmatpush1.msra.mxu0 %v67
  %107 = vmatprep.subr.mxu0 0.0
  %108 = vmatpush1.msra.mxu0 %v68
  %109 = vmatprep.subr.mxu0 0.0
  %110 = vmatpush1.msra.mxu0 %v69
  %111 = vmatprep.subr.mxu0 0.0
  %112 = vmatpush1.msra.mxu0 %v70
  %113 = vmatprep.subr.mxu0 0.0
  %114 = vmatpush1.msra.mxu0 %v71
  %115 = vmatprep.subr.mxu0 0.0
  %116 = vmatpush1.msra.mxu0 %v72
  %117 = vmatprep.subr.mxu0 0.0
  %118 = vmatpush1.msra.mxu0 %v73
  %119 = vmatprep.subr.mxu0 0.0
  %120 = vmatpush1.msra.mxu0 %v74
  %121 = vmatprep.subr.mxu0 0.0
  %122 = vmatpush1.msra.mxu0 %v75
  %123 = vmatprep.subr.mxu0 0.0
  %124 = vmatpush1.msra.mxu0 %v76
  %125 = vmatprep.subr.mxu0 0.0
  %126 = vmatpush1.msra.mxu0 %v77
  %127 = vmatprep.subr.mxu0 0.0
  %128 = vmatpush1.msra.mxu0 %v78
  %129 = vmatprep.subr.mxu0 0.0
  %130 = vmatpush1.msra.mxu0 %v79
  %131 = vmatprep.subr.mxu0 0.0
  %132 = vmatpush1.msra.mxu0 %v80
  %133 = vmatprep.subr.mxu0 0.0
  %134 = vmatpush1.msra.mxu0 %v81
  %135 = vmatprep.subr.mxu0 0.0
  %136 = vmatpush1.msra.mxu0 %v82
  %137 = vmatprep.subr.mxu0 0.0
  %138 = vmatpush1.msra.mxu0 %v83
  %139 = vmatprep.subr.mxu0 0.0
  %140 = vmatpush1.msra.mxu0 %v84
  %141 = vmatprep.subr.mxu0 0.0
  %142 = vmatpush1.msra.mxu0 %v85
  %143 = vmatprep.subr.mxu0 0.0
  %144 = vmatpush1.msra.mxu0 %v86
  %145 = vmatprep.subr.mxu0 0.0
  %146 = vmatpush1.msra.mxu0 0.0
  %147 = vmatprep.subr.mxu0 0.0
  %148 = vmatpush1.msra.mxu0 0.0
  %149 = vmatprep.subr.mxu0 0.0
  %150 = vmatpush1.msra.mxu0 0.0
  %151 = vmatprep.subr.mxu0 0.0
  %152 = vmatpush1.msra.mxu0 0.0
  %153 = vmatprep.subr.mxu0 0.0
  %154 = vmatpush1.msra.mxu0 0.0
  %155 = vmatprep.subr.mxu0 0.0
  %156 = vmatpush1.msra.mxu0 0.0
  %157 = vmatprep.subr.mxu0 0.0
  %158 = vmatpush1.msra.mxu0 0.0
  %159 = vmatprep.subr.mxu0 0.0
  %160 = vmatpush1.msra.mxu0 0.0
  %161 = vmatprep.mubr.f32.mxu0 %v87
  %162 = vmatmul.mubr.f32.gmra.mrb[0].mxu0 %v59
  %v163 = vpop.f32.mrb[0].mxu0
  %v164 = vadd.f32 0.0, %v163
  %v165 = vpop.f32.mrb[0].mxu0
  %166 = vmatprep.mubr.f32.mxu0 %v90
  %167 = vmatmul.mubr.f32.gmra.mrb[0].mxu0 %v60
  %v168 = vpop.f32.mrb[0].mxu0
  %v169 = vadd.f32 0.0, %v168
  %v170 = vpop.f32.mrb[0].mxu0
  %171 = vmatprep.mubr.f32.mxu0 %v92
  %172 = vmatmul.mubr.f32.gmra.mrb[0].mxu0 %v61
  %v173 = vpop.f32.mrb[0].mxu0
  %v174 = vadd.f32 0.0, %v173
  %v175 = vpop.f32.mrb[0].mxu0
  %176 = vmatprep.mubr.f32.mxu0 %v95
  %177 = vmatmul.mubr.f32.gmra.mrb[0].mxu0 %v62
  %v178 = vpop.f32.mrb[0].mxu0
  %v179 = vadd.f32 0.0, %v178
  %v180 = vpop.f32.mrb[0].mxu0
  %181 = vdwg.mxu0
  %182 = vst [vmem:[%s2] sm:$0xff] %v164
  %183 = vst [vmem:[%s2 + $0x8] sm:$0xff] %v169
  %184 = vst [vmem:[%s2 + $0x10] sm:$0xff] %v174
  %185 = vst [vmem:[%s2 + $0x18] sm:$0xff] %v179
  %v186 = vadd.f32 %v164, %v169
  %v187 = vadd.f32 %v186, %v174
  %v188 = vadd.f32 %v187, %v179
  %v189 = vrot.slane %v188, 4
  %v190 = vadd.f32 %v188, %v189
  %v191 = vrot.slane %v190, 2
  %v192 = vadd.f32 %v190, %v191
  %v193 = vrot.slane %v192, 1
  %v194 = vadd.f32 %v192, %v193
  %195 = vst [vmem:[%s3] sm:$0x1] %v194
  %v196 = vmul.f32 %v164, %v164
  %v197 = vmul.f32 %v169, %v169
  %v198 = vmul.f32 %v174, %v174
  %v199 = vmul.f32 %v179, %v179
  %v200 = vadd.f32 %v196, %v197
  %v201 = vadd.f32 %v200, %v198
  %v202 = vadd.f32 %v201, %v199
  %v203 = vrot.slane %v202, 4
  %v204 = vadd.f32 %v202, %v203
  %v205 = vrot.slane %v204, 2
  %v206 = vadd.f32 %v204, %v205
  %v207 = vrot.slane %v206, 1
  %v208 = vadd.f32 %v206, %v207
  %209 = vst [vmem:[%s4] sm:$0x1] %v208
  // Predicated region
  $region10: #{_conv_block_forward_impl.2} parent=0 // pred_check
    _
  $region11: #{_conv_block_forward_impl.2} parent=0 // pred_check_branch
    %211 = sbr.rel (0) target = $region13
  $region12: #{_conv_block_forward_impl.2} parent=0 // pred_region
    _
  $region13: #{_conv_block_forward_impl.2} parent=0 // pred_fallthru
    _
  // Predicated region
  $region14: #{_conv_block_forward_impl.2} parent=0 // pred_check
    _
  $region15: #{_conv_block_forward_impl.2} parent=0 // pred_check_branch
    %213 = sbr.rel (0) target = $region17
  $region16: #{_conv_block_forward_impl.2} parent=0 // pred_region
    _
  $region17: #{_conv_block_forward_impl.2} parent=0 // pred_fallthru
    _
  // Predicated region
  $region18: #{_conv_block_forward_impl.2} parent=0 // pred_check
    _
  $region19: #{_conv_block_forward_impl.2} parent=0 // pred_check_branch
    %215 = sbr.rel (0) target = $region21
  $region20: #{_conv_block_forward_impl.2} parent=0 // pred_region
    _
  $region21: #{_conv_block_forward_impl.2} parent=0 // pred_fallthru
    _
  // Predicated region
  $region22: #{_conv_block_forward_impl.2} parent=0 // pred_check
    _
  $region23: #{_conv_block_forward_impl.2} parent=0 // pred_check_branch
    %217 = sbr.rel (0) target = $region25
  $region24: #{_conv_block_forward_impl.2} parent=0 // pred_region
    _
  $region25: #{_conv_block_forward_impl.2} parent=0 // pred_fallthru
    _
  // Predicated region
  $region26: #{_conv_block_forward_impl.2} parent=0 // pred_check
    _
  $region27: #{_conv_block_forward_impl.2} parent=0 // pred_check_branch
    %219 = sbr.rel (0) target = $region29
  $region28: #{_conv_block_forward_impl.2} parent=0 // pred_region
    _
  $region29: #{_conv_block_forward_impl.2} parent=0 // pred_fallthru
    _
  // Predicated region
  $region30: #{_conv_block_forward_impl.2} parent=0 // pred_check
    _
  $region31: #{_conv_block_forward_impl.2} parent=0 // pred_check_branch
    %221 = sbr.rel (0) target = $region33
  $region32: #{_conv_block_forward_impl.2} parent=0 // pred_region
    _
  $region33: #{_conv_block_forward_impl.2} parent=0 // pred_fallthru
    _

// kernel: _conv_block_forward_impl.3
$region0: #{_conv_block_forward_impl.3}
  #allocation0 [shape = 'u32[]', space=smem, size = 0x4, offset = 0x4, fixed_abs, tag = 'smem constant byte address 0x4 - core index']
  #allocation1 [shape = 'u32[144,128]{1,0:T(1,128)}', space=vmem, size = 0x12000, scoped, tag = 'internal scratch']
  %s0 = inlined_call_operand.vmem [shape: f32[32,128], index: 0, kind: input, shape index: {}, may-alias: {0,3}]
  %s1 = inlined_call_operand.vmem [shape: f32[1,128], index: 1, kind: input, shape index: {}]
  %s2 = inlined_call_operand.vmem [shape: f32[1,128], index: 2, kind: input, shape index: {}]
  %s3 = inlined_call_operand.vmem [shape: f32[32,128], index: 3, kind: output, shape index: {}, may-alias: {0,3}]
  %s4 = sld [smem:[#allocation0]]
  $region22: #{_conv_block_forward_impl.3} parent=0
    _
  %s6 = ssub.s32 1, %s4
  %s7 = scalar_select 0, %s6, %s4
  // Predicated region
  $region2: #{_conv_block_forward_impl.3} parent=0 // pred_check
    _
  $region3: #{_conv_block_forward_impl.3} parent=0 // pred_check_branch
    %9 = sbr.rel (0) target = $region5
  $region4: #{_conv_block_forward_impl.3} parent=0 // pred_region
    _
  $region5: #{_conv_block_forward_impl.3} parent=0 // pred_fallthru
    _
  // Predicated region
  $region6: #{_conv_block_forward_impl.3} parent=0 // pred_check
    _
  $region7: #{_conv_block_forward_impl.3} parent=0 // pred_check_branch
    %11 = sbr.rel (0) target = $region9
  $region8: #{_conv_block_forward_impl.3} parent=0 // pred_region
    _
  $region9: #{_conv_block_forward_impl.3} parent=0 // pred_fallthru
    _
  // Predicated region
  $region10: #{_conv_block_forward_impl.3} parent=0 // pred_check
    _
  $region11: #{_conv_block_forward_impl.3} parent=0 // pred_check_branch
    %13 = sbr.rel (0) target = $region13
  $region12: #{_conv_block_forward_impl.3} parent=0 // pred_region
    _
  $region13: #{_conv_block_forward_impl.3} parent=0 // pred_fallthru
    _
  %v14 = vld [vmem:[%s0] sm:$0xff]
  %v15 = vld [vmem:[%s0 + $0x8] sm:$0xff]
  %v16 = vld [vmem:[%s0 + $0x10] sm:$0xff]
  %v17 = vld [vmem:[%s0 + $0x18] sm:$0xff]
  %v18 = vld [vmem:[%s1] sm:$0x1]
  %v20 = vlaneseq
  %v21 = vshrl.u32 %v20, 7
  %v22 = vsub.s32 0, %v21
  %v23 = vrot.slane %v18, %v22
  %v25 = vmul.f32 %v14, %v23
  %v26 = vmul.f32 %v15, %v23
  %v27 = vmul.f32 %v16, %v23
  %v28 = vmul.f32 %v17, %v23
  %v29 = vld [vmem:[%s2] sm:$0x1]
  %v31 = vlaneseq
  %v32 = vshrl.u32 %v31, 7
  %v33 = vsub.s32 0, %v32
  %v34 = vrot.slane %v29, %v33
  %v36 = vadd.f32 %v25, %v34
  %v37 = vadd.f32 %v26, %v34
  %v38 = vadd.f32 %v27, %v34
  %v39 = vadd.f32 %v28, %v34
  %v40 = vmax.f32 %v36, 0.0
  %v41 = vmax.f32 %v37, 0.0
  %v42 = vmax.f32 %v38, 0.0
  %v43 = vmax.f32 %v39, 0.0
  %44 = vst [vmem:[%s3] sm:$0xff] %v40
  %45 = vst [vmem:[%s3 + $0x8] sm:$0xff] %v41
  %46 = vst [vmem:[%s3 + $0x10] sm:$0xff] %v42
  %47 = vst [vmem:[%s3 + $0x18] sm:$0xff] %v43
  // Predicated region
  $region14: #{_conv_block_forward_impl.3} parent=0 // pred_check
    _
  $region15: #{_conv_block_forward_impl.3} parent=0 // pred_check_branch
    %49 = sbr.rel (0) target = $region17
  $region16: #{_conv_block_forward_impl.3} parent=0 // pred_region
    _
  $region17: #{_conv_block_forward_impl.3} parent=0 // pred_fallthru
    _
  // Predicated region
  $region18: #{_conv_block_forward_impl.3} parent=0 // pred_check
    _
  $region19: #{_conv_block_forward_impl.3} parent=0 // pred_check_branch
    %51 = sbr.rel (0) target = $region21
  $region20: #{_conv_block_forward_impl.3} parent=0 // pred_region
    _
  $region21: #{_conv_block_forward_impl.3} parent=0 // pred_fallthru
    _

</llo_original>
